<compile_context>
chip_gen: v6e
topology: v6e:2x2x1
jax: 0.10.0
libtpu: 0.0.40
codegen_flags: <defaults>
</compile_context>

<pallas_src>
import functools

import numpy as np
import jax
import jax.numpy as jnp
from jax.experimental import pallas as pl
from jax.experimental.pallas import tpu as pltpu


_INV_SQRT2 = 0.7071067811865476
_SQRT_2_OVER_PI = 0.7978845608028654


def _round_up(v, mult):
    return -(-v // mult) * mult


def _vmem_capacity_bytes():
    """Generation-aware VMEM capacity (128 MiB on v5e/v6e, 64 MiB/TC on v7x)."""
    try:
        cap = int(pltpu.get_tpu_info().vmem_capacity_bytes)
        if cap > 0:
            return cap
    except Exception:
        pass
    return 64 << 20  # conservative fallback: safe on every generation


_VMEM_CAP = _vmem_capacity_bytes()
_VMEM_LIMIT_BYTES = min(int(_VMEM_CAP * 0.85), _VMEM_CAP - (8 << 20))
_VMEM_BUDGET = _VMEM_LIMIT_BYTES - (8 << 20)


def _supports_buffered():
    """Feature check (no full trace/compile probe, no swallowed lowering errors)."""
    if not hasattr(pl, "Buffered"):
        return False
    try:
        pl.BlockSpec((8, 128), lambda i: (0, 0), pipeline_mode=pl.Buffered(1))
        return True
    except TypeError:
        return False


_HAS_BUFFERED = _supports_buffered()


def _gelu(x, approximate):
    if approximate:
        # tanh GELU: the transcendental runs on the EUP slot (otherwise idle);
        # only a handful of VALU ops remain.  Max per-element delta vs exact
        # GELU is ~1e-3 (largest near |x|~2).
        u = _SQRT_2_OVER_PI * (x + 0.044715 * (x * x * x))
        return 0.5 * x * (1.0 + jnp.tanh(u))
    # Exact GELU, matching torch.nn.GELU() (approximate='none').  lax.erf has no
    # EUP instruction and lowers to a ~20-op VPU polynomial per element, so this
    # path is VALU-bound; prefer gelu_approximate=True when the ~1e-3 numerics
    # delta is acceptable.
    return 0.5 * x * (1.0 + jax.lax.erf(x * _INV_SQRT2))


def mlp_kernel(x_ref, w1_ref, b1_ref, w2_ref, b2_ref, w3_ref, o_ref, *,
               out_dim, gelu_approximate):
    cdt = w1_ref.dtype              # matmul operand dtype (f32 or bf16)
    x = x_ref[...].astype(cdt)
    # layer 1: (bm, in) @ (in, Hp) + b1 -> GELU (bias + GELU in f32)
    h = jnp.dot(x, w1_ref[...], preferred_element_type=jnp.float32) + b1_ref[...]
    h = _gelu(h, gelu_approximate)
    # layer 2: (bm, Hp) @ (Hp, Hp) + b2 -> GELU
    h = jnp.dot(h.astype(cdt), w2_ref[...], preferred_element_type=jnp.float32) + b2_ref[...]
    h = _gelu(h, gelu_approximate)
    # layer 3 (no bias): (bm, Hp) @ (Hp, Op); slice padded columns in-register so
    # only the real out_dim columns are stored (no post-kernel slice pass).
    y = jnp.dot(h.astype(cdt), w3_ref[...], preferred_element_type=jnp.float32)
    o_ref[...] = y[:, :out_dim].astype(o_ref.dtype)


_BLOCK_M_CANDIDATES = (2048, 1024, 512, 256, 128, 64, 32, 16, 8)


def _pick_block_m(m, input_dim, hid_p, out_p, out_dim, w_itemsize, single_buffer):
    """Largest row tile that fits the VMEM budget, keeps >=2 grid steps when possible."""
    m8 = max(_round_up(m, 8), 8)
    cap = m8
    if m > 8:
        # Keep the 'parallel' row grid at >= 2 steps so v7x's two TensorCores
        # both get work; one extra grid step on 1-TC chips is ~0.35us (negligible).
        cap = min(cap, max(_round_up(pl.cdiv(m, 2), 8), 8))

    wmul = 1 if single_buffer else 2   # honest accounting: single-buffered weights
    w_bytes = (wmul * w_itemsize *
               (input_dim * hid_p + hid_p * hid_p + hid_p * out_p)
               + wmul * 4 * 2 * hid_p)
    # TODO(synk): if w_bytes alone exceeds the budget (very large hidden, esp. on
    # v7x's 64 MiB VMEM), tile the hidden dim on an 'arbitrary' grid axis with a
    # VMEM accumulator (or switch to bf16 weights) instead of shrinking block_m.

    for bm in _BLOCK_M_CANDIDATES:
        if bm > cap:
            continue
        # double-buffered x / out tiles + f32 intermediates (2*hid_p + out_p wide)
        act_bytes = 4 * bm * (2 * input_dim + 2 * out_dim + 2 * hid_p + out_p)
        if w_bytes + act_bytes <= _VMEM_BUDGET:
            return bm
    return 8


def prepare_params(params, compute_dtype=jnp.float32):
    """Zero-pad hidden/out dims to multiples of 128 (lane-dense, numerically exact).

    Weights are cast to `compute_dtype` (f32 exact, or bf16 for MXU throughput and
    half the weight footprint; accumulation stays f32).  Biases stay f32.
    """
    w1, b1, w2, b2, w3 = params
    input_dim, hidden = w1.shape
    out_dim = w3.shape[1]
    hid_p = _round_up(hidden, 128)
    out_p = _round_up(out_dim, 128)

    def pad2(a, rows, cols, dtype):
        a = a.astype(dtype)
        return jnp.pad(a, ((0, rows - a.shape[0]), (0, cols - a.shape[1])))

    return (
        pad2(w1, input_dim, hid_p, compute_dtype),
        pad2(b1, 1, hid_p, jnp.float32),
        pad2(w2, hid_p, hid_p, compute_dtype),
        pad2(b2, 1, hid_p, jnp.float32),
        pad2(w3, hid_p, out_p, compute_dtype),
    )


def nonlinear_forward(x, padded_params, proj_dim, n_comp, *,
                      block_m=None, gelu_approximate=False):
    """x: (..., input_dim) -> (..., proj_dim, n_comp)."""
    w1, b1, w2, b2, w3 = padded_params
    leading = x.shape[:-1]
    input_dim = x.shape[-1]
    assert w1.shape[0] == input_dim
    hid_p = w1.shape[1]
    out_p = w3.shape[1]
    out_dim = proj_dim * n_comp

    m = int(np.prod(leading)) if leading else 1
    x2 = x.reshape(m, input_dim)

    if block_m is None:
        block_m = _pick_block_m(m, input_dim, hid_p, out_p, out_dim,
                                jnp.dtype(w1.dtype).itemsize, _HAS_BUFFERED)
    grid_m = pl.cdiv(m, block_m)   # ragged last tile handled by Pallas (rows independent)

    kernel = functools.partial(mlp_kernel, out_dim=out_dim,
                               gelu_approximate=gelu_approximate)

    if _HAS_BUFFERED:
        # Grid-invariant operands: don't double-buffer them.
        def wspec(shape):
            return pl.BlockSpec(shape, lambda i: (0, 0), pipeline_mode=pl.Buffered(1))
    else:
        def wspec(shape):
            return pl.BlockSpec(shape, lambda i: (0, 0))

    out = pl.pallas_call(
        kernel,
        out_shape=jax.ShapeDtypeStruct((m, out_dim), x.dtype),
        grid_spec=pltpu.PrefetchScalarGridSpec(
            num_scalar_prefetch=0,
            grid=(grid_m,),
            in_specs=[
                pl.BlockSpec((block_m, input_dim), lambda i: (i, 0)),  # x rows
                wspec((input_dim, hid_p)),   # W1
                wspec((1, hid_p)),           # b1
                wspec((hid_p, hid_p)),       # W2
                wspec((1, hid_p)),           # b2
                wspec((hid_p, out_p)),       # W3 (no bias)
            ],
            out_specs=pl.BlockSpec((block_m, out_dim), lambda i: (i, 0)),
        ),
        compiler_params=pltpu.CompilerParams(
            dimension_semantics=("parallel",),
            vmem_limit_bytes=_VMEM_LIMIT_BYTES,
        ),
    )(x2, w1, b1, w2, b2, w3)

    return out.reshape(*leading, proj_dim, n_comp)


def init_params(key, input_dim, proj_dim, n_comp, dtype=jnp.float32):
    """nn.Linear-style U(-1/sqrt(fan_in), 1/sqrt(fan_in)) init; weights stored (in, out)."""
    hidden = proj_dim * n_comp * 2
    out_dim = proj_dim * n_comp
    ks = jax.random.split(key, 5)

    def uinit(k, shape, fan_in):
        bound = 1.0 / np.sqrt(fan_in)
        return jax.random.uniform(k, shape, dtype, -bound, bound)

    w1 = uinit(ks[0], (input_dim, hidden), input_dim)
    b1 = uinit(ks[1], (1, hidden), input_dim)
    w2 = uinit(ks[2], (hidden, hidden), hidden)
    b2 = uinit(ks[3], (1, hidden), hidden)
    w3 = uinit(ks[4], (hidden, out_dim), hidden)
    return w1, b1, w2, b2, w3


def reference_forward(x, params, proj_dim, n_comp):
    w1, b1, w2, b2, w3 = params
    h = jax.nn.gelu(x @ w1 + b1[0], approximate=False)
    h = jax.nn.gelu(h @ w2 + b2[0], approximate=False)
    y = h @ w3
    return y.reshape(*x.shape[:-1], proj_dim, n_comp)


if __name__ == "__main__":
    key = jax.random.PRNGKey(0)
    k_params, k_x1, k_x2 = jax.random.split(key, 3)

    input_dim, proj_dim, n_comp = 32, 8, 4   # hidden 64 -> 128 padded, out 32 (unpadded output)
    params = init_params(k_params, input_dim, proj_dim, n_comp)

    # Exact f32 path (matches the PyTorch module's numerics bit-for-bit semantics).
    padded_f32 = prepare_params(params, compute_dtype=jnp.float32)

    # Small case (grid of 2 tiny tiles).
    x_small = jax.random.normal(k_x1, (2, 8, input_dim), jnp.float32)
    out_small = jax.block_until_ready(
        nonlinear_forward(x_small, padded_f32, proj_dim, n_comp))
    assert out_small.shape == (2, 8, proj_dim, n_comp)
    np.testing.assert_allclose(
        np.asarray(out_small),
        np.asarray(reference_forward(x_small, params, proj_dim, n_comp)),
        rtol=1e-5, atol=1e-5)

    # Larger M: multi-tile grid with a ragged last tile (no row padding copy).
    x_big = jax.random.normal(k_x2, (3, 50, input_dim), jnp.float32)
    ref_big = reference_forward(x_big, params, proj_dim, n_comp)
    out_big = jax.block_until_ready(
        nonlinear_forward(x_big, padded_f32, proj_dim, n_comp))
    assert out_big.shape == (3, 50, proj_dim, n_comp)
    np.testing.assert_allclose(np.asarray(out_big), np.asarray(ref_big),
                               rtol=1e-5, atol=1e-5)

    # Fast GELU path (tanh on the EUP): recommended for throughput; ~1e-3-level delta.
    out_fast = jax.block_until_ready(
        nonlinear_forward(x_big, padded_f32, proj_dim, n_comp, gelu_approximate=True))
    np.testing.assert_allclose(np.asarray(out_fast), np.asarray(ref_big),
                               rtol=5e-2, atol=5e-3)

    # bf16 matmul operands + tanh GELU (f32 accumulation) — recommended fast path
    # on v6e/v7x; looser numerics by design.
    padded_bf16 = prepare_params(params, compute_dtype=jnp.bfloat16)
    out_bf16 = jax.block_until_ready(
        nonlinear_forward(x_big, padded_bf16, proj_dim, n_comp, gelu_approximate=True))
    np.testing.assert_allclose(np.asarray(out_bf16), np.asarray(ref_big),
                               rtol=1e-1, atol=5e-2)

    print("KERNEL_OK")
</pallas_src>

<mosaic_0001>
module attributes {stable_mosaic.version = 11 : i64} {
  func.func @mlp_kernel(%arg0: i32, %arg1: memref<8x32xf32, #tpu.memory_space<vmem>>, %arg2: memref<32x128xf32, #tpu.memory_space<vmem>>, %arg3: memref<1x128xf32, #tpu.memory_space<vmem>>, %arg4: memref<128x128xf32, #tpu.memory_space<vmem>>, %arg5: memref<1x128xf32, #tpu.memory_space<vmem>>, %arg6: memref<128x128xf32, #tpu.memory_space<vmem>>, %arg7: memref<8x32xf32, #tpu.memory_space<vmem>>) attributes {dimension_semantics = [#tpu.dimension_semantics<parallel>], iteration_bounds = array<i64: 2>, scalar_prefetch = 0 : i64, scratch_operands = 0 : i64, tpu.core_type = #tpu.core_type<tc>, window_params = [{transform_indices = @transform_0, window_bounds = array<i64: 8, 32>}, {pipeline_mode = #tpu.pipeline_mode<synchronous>, transform_indices = @transform_1, window_bounds = array<i64: 32, 128>}, {pipeline_mode = #tpu.pipeline_mode<synchronous>, transform_indices = @transform_2, window_bounds = array<i64: 1, 128>}, {pipeline_mode = #tpu.pipeline_mode<synchronous>, transform_indices = @transform_3, window_bounds = array<i64: 128, 128>}, {pipeline_mode = #tpu.pipeline_mode<synchronous>, transform_indices = @transform_4, window_bounds = array<i64: 1, 128>}, {pipeline_mode = #tpu.pipeline_mode<synchronous>, transform_indices = @transform_5, window_bounds = array<i64: 128, 128>}, {transform_indices = @transform_6, window_bounds = array<i64: 8, 32>}]} {
    %c0 = arith.constant 0 : index
    %c0_0 = arith.constant 0 : index
    %0 = vector.load %arg1[%c0, %c0_0] : memref<8x32xf32, #tpu.memory_space<vmem>>, vector<8x32xf32>
    %c0_1 = arith.constant 0 : index
    %c0_2 = arith.constant 0 : index
    %1 = vector.load %arg2[%c0_1, %c0_2] : memref<32x128xf32, #tpu.memory_space<vmem>>, vector<32x128xf32>
    %cst = arith.constant dense<0.000000e+00> : vector<8x128xf32>
    %2 = tpu.matmul %0, %1, %cst {dimension_numbers = #tpu.dot_dimension_numbers<[1], [0], [0], [1], [0, 0, 1, 1], [], []>} : vector<8x32xf32>, vector<32x128xf32>, vector<8x128xf32> -> vector<8x128xf32>
    %c0_3 = arith.constant 0 : index
    %c0_4 = arith.constant 0 : index
    %3 = vector.load %arg3[%c0_3, %c0_4] : memref<1x128xf32, #tpu.memory_space<vmem>>, vector<1x128xf32>
    %4 = vector.broadcast %3 : vector<1x128xf32> to vector<8x128xf32>
    %5 = arith.addf %2, %4 : vector<8x128xf32>
    %cst_5 = arith.constant 5.000000e-01 : f32
    %6 = vector.broadcast %cst_5 : f32 to vector<8x128xf32>
    %7 = arith.mulf %6, %5 : vector<8x128xf32>
    %cst_6 = arith.constant 0.707106769 : f32
    %8 = vector.broadcast %cst_6 : f32 to vector<8x128xf32>
    %9 = arith.mulf %5, %8 : vector<8x128xf32>
    %10 = math.erf %9 : vector<8x128xf32>
    %cst_7 = arith.constant 1.000000e+00 : f32
    %11 = vector.broadcast %cst_7 : f32 to vector<8x128xf32>
    %12 = arith.addf %11, %10 : vector<8x128xf32>
    %13 = arith.mulf %7, %12 : vector<8x128xf32>
    %c0_8 = arith.constant 0 : index
    %c0_9 = arith.constant 0 : index
    %14 = vector.load %arg4[%c0_8, %c0_9] : memref<128x128xf32, #tpu.memory_space<vmem>>, vector<128x128xf32>
    %cst_10 = arith.constant dense<0.000000e+00> : vector<8x128xf32>
    %15 = tpu.matmul %13, %14, %cst_10 {dimension_numbers = #tpu.dot_dimension_numbers<[1], [0], [0], [1], [0, 0, 1, 1], [], []>} : vector<8x128xf32>, vector<128x128xf32>, vector<8x128xf32> -> vector<8x128xf32>
    %c0_11 = arith.constant 0 : index
    %c0_12 = arith.constant 0 : index
    %16 = vector.load %arg5[%c0_11, %c0_12] : memref<1x128xf32, #tpu.memory_space<vmem>>, vector<1x128xf32>
    %17 = vector.broadcast %16 : vector<1x128xf32> to vector<8x128xf32>
    %18 = arith.addf %15, %17 : vector<8x128xf32>
    %cst_13 = arith.constant 5.000000e-01 : f32
    %19 = vector.broadcast %cst_13 : f32 to vector<8x128xf32>
    %20 = arith.mulf %19, %18 : vector<8x128xf32>
    %cst_14 = arith.constant 0.707106769 : f32
    %21 = vector.broadcast %cst_14 : f32 to vector<8x128xf32>
    %22 = arith.mulf %18, %21 : vector<8x128xf32>
    %23 = math.erf %22 : vector<8x128xf32>
    %cst_15 = arith.constant 1.000000e+00 : f32
    %24 = vector.broadcast %cst_15 : f32 to vector<8x128xf32>
    %25 = arith.addf %24, %23 : vector<8x128xf32>
    %26 = arith.mulf %20, %25 : vector<8x128xf32>
    %c0_16 = arith.constant 0 : index
    %c0_17 = arith.constant 0 : index
    %27 = vector.load %arg6[%c0_16, %c0_17] : memref<128x128xf32, #tpu.memory_space<vmem>>, vector<128x128xf32>
    %cst_18 = arith.constant dense<0.000000e+00> : vector<8x128xf32>
    %28 = tpu.matmul %26, %27, %cst_18 {dimension_numbers = #tpu.dot_dimension_numbers<[1], [0], [0], [1], [0, 0, 1, 1], [], []>} : vector<8x128xf32>, vector<128x128xf32>, vector<8x128xf32> -> vector<8x128xf32>
    %29 = vector.extract_strided_slice %28 {offsets = [0, 0], sizes = [8, 32], strides = [1, 1]} : vector<8x128xf32> to vector<8x32xf32>
    %c0_19 = arith.constant 0 : index
    %c0_20 = arith.constant 0 : index
    %30 = vector.load %arg7[%c0_19, %c0_20] : memref<8x32xf32, #tpu.memory_space<vmem>>, vector<8x32xf32>
    tpu.vector_store %arg7[%c0_19, %c0_20], %29 {strides = array<i32>} : memref<8x32xf32, #tpu.memory_space<vmem>>, vector<8x32xf32>,
    return
  }
  func.func @transform_0(%arg0: i32) -> (i32, i32) {
    %c0_i32 = arith.constant 0 : i32
    %c0_i32_0 = arith.constant 0 : i32
    return %arg0, %c0_i32 : i32, i32
  }
  func.func @transform_1(%arg0: i32) -> (i32, i32) {
    %c0_i32 = arith.constant 0 : i32
    %c0_i32_0 = arith.constant 0 : i32
    %c0_i32_1 = arith.constant 0 : i32
    return %c0_i32, %c0_i32_0 : i32, i32
  }
  func.func @transform_2(%arg0: i32) -> (i32, i32) {
    %c0_i32 = arith.constant 0 : i32
    %c0_i32_0 = arith.constant 0 : i32
    %c0_i32_1 = arith.constant 0 : i32
    return %c0_i32, %c0_i32_0 : i32, i32
  }
  func.func @transform_3(%arg0: i32) -> (i32, i32) {
    %c0_i32 = arith.constant 0 : i32
    %c0_i32_0 = arith.constant 0 : i32
    %c0_i32_1 = arith.constant 0 : i32
    return %c0_i32, %c0_i32_0 : i32, i32
  }
  func.func @transform_4(%arg0: i32) -> (i32, i32) {
    %c0_i32 = arith.constant 0 : i32
    %c0_i32_0 = arith.constant 0 : i32
    %c0_i32_1 = arith.constant 0 : i32
    return %c0_i32, %c0_i32_0 : i32, i32
  }
  func.func @transform_5(%arg0: i32) -> (i32, i32) {
    %c0_i32 = arith.constant 0 : i32
    %c0_i32_0 = arith.constant 0 : i32
    %c0_i32_1 = arith.constant 0 : i32
    return %c0_i32, %c0_i32_0 : i32, i32
  }
  func.func @transform_6(%arg0: i32) -> (i32, i32) {
    %c0_i32 = arith.constant 0 : i32
    %c0_i32_0 = arith.constant 0 : i32
    return %arg0, %c0_i32 : i32, i32
  }
}

</mosaic_0001>

<llo_original>
// kernel: tpu_custom_call.1
$region0: #{tpu_custom_call.1}
  #allocation0 [shape = 'u32[]', space=smem, size = 0x4, offset = 0x4, fixed_abs, tag = 'smem constant byte address 0x4 - core index']
  #allocation1 [shape = 'u32[144,128]{1,0:T(1,128)}', space=vmem, size = 0x12000, scoped, tag = 'internal scratch']
  %s0 = inlined_call_operand.hbm [shape: f32[16,32], index: 0, kind: input, shape index: {}]
  %s1 = inlined_call_operand.hbm [shape: f32[32,128], index: 1, kind: input, shape index: {}]
  %s2 = inlined_call_operand.vmem [shape: f32[1,128], index: 2, kind: input, shape index: {}]
  %s3 = inlined_call_operand.hbm [shape: f32[128,128], index: 3, kind: input, shape index: {}]
  %s4 = inlined_call_operand.vmem [shape: f32[1,128], index: 4, kind: input, shape index: {}]
  %s5 = inlined_call_operand.hbm [shape: f32[128,128], index: 5, kind: input, shape index: {}]
  %s6 = inlined_call_operand.hbm [shape: f32[16,32], index: 6, kind: output, shape index: {}]
  %s7 = sld [smem:[#allocation0]]
  $region73: #{tpu_custom_call.1} parent=0
    _
  %s9 = ssub.s32 1, %s7
  %s10 = scalar_select 0, %s9, %s7
  $region1: #{tpu_custom_call.1} parent=0
    #allocation2 [shape = 'u8[8192]{0}', space=vmem, size = 0x2000, scoped, tag = 'input window, operand 0']
    #allocation3 [shape = 's32[2]{0}', space=sflag, size = 0x8, scoped, tag = 'scoped memory for tpu_custom_call.1']
    #allocation4 [shape = 's32[2]{0}', space=sflag, size = 0x8, scoped, tag = 'scoped memory for tpu_custom_call.1']
    #allocation5 [shape = 'u8[16384]{0}', space=vmem, size = 0x4000, scoped, tag = 'input window, operand 1, single buffered']
    #allocation6 [shape = 's32[1]{0}', space=sflag, size = 0x4, scoped, tag = 'scoped memory for tpu_custom_call.1']
    #allocation7 [shape = 'u8[65536]{0}', space=vmem, size = 0x10000, scoped, tag = 'input window, operand 3, single buffered']
    #allocation8 [shape = 'u8[65536]{0}', space=vmem, size = 0x10000, scoped, tag = 'input window, operand 5, single buffered']
    #allocation9 [shape = 's32[1]{0}', space=sflag, size = 0x4, scoped, tag = 'scoped memory for tpu_custom_call.1']
    #allocation10 [shape = 'u8[8192]{0}', space=vmem, size = 0x2000, scoped, tag = 'output window, operand 0']
    %11 = vsyncpa [#allocation3], 0
    %s12 = scalar_lea.sflag [#allocation3], 1
    %13 = vsyncpa %s12, 0
    %14 = vsyncpa [#allocation6], 0
    %15 = vsyncpa [#allocation9], 0
    %16 = vsyncpa [#allocation4], 0
    %s17 = scalar_lea.sflag [#allocation4], 1
    %18 = vsyncpa %s17, 0
    loop: start=0, step=1, limit=4
    $region2: #{tpu_custom_call.1} parent=1 // loop_pre_header
      _
    $region3: #{tpu_custom_call.1} parent=1 // loop_header
      %s20 = sphi 0, %s24
      %p21 = scmp.ge.s32.totalorder %s20, 4
      %s30 = sphi 0, %s32
      %s33 = sphi 0, %s30
      %s34 = sphi 0, %s33
      %s50 = sphi 0, %s34
      %s54 = sphi 0, %s54
      %s56 = sphi 0, %s54
      %s57 = sphi 0, %s56
      %s71 = sphi 0, %s57
      %s75 = sphi 0, %s75
      %s77 = sphi 0, %s75
      %s78 = sphi 0, %s77
      %s92 = sphi 0, %s78
      %s96 = sphi 0, %s96
      %s98 = sphi 0, %s96
      %s99 = sphi 0, %s98
      %s113 = sphi 0, %s99
      %s117 = sphi 0, %s117
      %s119 = sphi 0, %s117
      %s120 = sphi 0, %s119
      %s134 = sphi 0, %s120
      %s138 = sphi 0, %s138
      %s140 = sphi 0, %s138
      %s141 = sphi 0, %s140
      %s155 = sphi 0, %s141
      %s161 = sphi 0, %s163
      %s164 = sphi 0, %s161
      %s165 = sphi 0, %s164
      %s181 = sphi 0, %s165
    $region4: #{tpu_custom_call.1} parent=1 // loop_header_branch
      %23 = sbr.rel (%p21) target = $region8
    $region5: #{tpu_custom_call.1} parent=1 // loop_body
      %s25 = ssub.s32 %s20, 1
      %s26 = ssub.s32 %s20, 2
      %s27 = sadd.s32 %s20, 1
      %s28 = ssub.s32 %s20, %s27
      %p29 = scmp.eq.s32.totalorder %s28, 0
      %s31 = sadd.s32 %s30, 1
      %s32 = scalar_select %p29, %s30, %s31
      %p35 = pneg %p29
      %p36 = scmp.eq.s32.totalorder %s20, 1
      %p37 = por %p35, %p36
      %p38 = scmp.ne.s32.totalorder %s30, %s33
      %p39 = scmp.eq.s32.totalorder %s20, 0
      %p40 = por %p38, %p39
      %p41 = scmp.ne.s32.totalorder %s30, %s33
      %p42 = scmp.eq.s32.totalorder %s25, 1
      %p43 = por %p41, %p42
      %p44 = scmp.ne.s32.totalorder %s33, %s34
      %p45 = scmp.eq.s32.totalorder %s25, 0
      %p46 = por %p44, %p45
      %p47 = scmp.ne.s32.totalorder %s33, %s34
      %p48 = scmp.eq.s32.totalorder %s26, 1
      %p49 = por %p47, %p48
      %p51 = scmp.ne.s32.totalorder %s34, %s50
      %p52 = scmp.eq.s32.totalorder %s26, 0
      %p53 = por %p51, %p52
      %s55 = sadd.s32 %s54, 1
      %p58 = scmp.eq.s32.totalorder %s20, 1
      %p59 = scmp.ne.s32.totalorder %s54, %s56
      %p60 = scmp.eq.s32.totalorder %s20, 0
      %p61 = por %p59, %p60
      %p62 = scmp.ne.s32.totalorder %s54, %s56
      %p63 = scmp.eq.s32.totalorder %s25, 1
      %p64 = por %p62, %p63
      %p65 = scmp.ne.s32.totalorder %s56, %s57
      %p66 = scmp.eq.s32.totalorder %s25, 0
      %p67 = por %p65, %p66
      %p68 = scmp.ne.s32.totalorder %s56, %s57
      %p69 = scmp.eq.s32.totalorder %s26, 1
      %p70 = por %p68, %p69
      %p72 = scmp.ne.s32.totalorder %s57, %s71
      %p73 = scmp.eq.s32.totalorder %s26, 0
      %p74 = por %p72, %p73
      %s76 = sadd.s32 %s75, 1
      %p79 = scmp.eq.s32.totalorder %s20, 1
      %p80 = scmp.ne.s32.totalorder %s75, %s77
      %p81 = scmp.eq.s32.totalorder %s20, 0
      %p82 = por %p80, %p81
      %p83 = scmp.ne.s32.totalorder %s75, %s77
      %p84 = scmp.eq.s32.totalorder %s25, 1
      %p85 = por %p83, %p84
      %p86 = scmp.ne.s32.totalorder %s77, %s78
      %p87 = scmp.eq.s32.totalorder %s25, 0
      %p88 = por %p86, %p87
      %p89 = scmp.ne.s32.totalorder %s77, %s78
      %p90 = scmp.eq.s32.totalorder %s26, 1
      %p91 = por %p89, %p90
      %p93 = scmp.ne.s32.totalorder %s78, %s92
      %p94 = scmp.eq.s32.totalorder %s26, 0
      %p95 = por %p93, %p94
      %s97 = sadd.s32 %s96, 1
      %p100 = scmp.eq.s32.totalorder %s20, 1
      %p101 = scmp.ne.s32.totalorder %s96, %s98
      %p102 = scmp.eq.s32.totalorder %s20, 0
      %p103 = por %p101, %p102
      %p104 = scmp.ne.s32.totalorder %s96, %s98
      %p105 = scmp.eq.s32.totalorder %s25, 1
      %p106 = por %p104, %p105
      %p107 = scmp.ne.s32.totalorder %s98, %s99
      %p108 = scmp.eq.s32.totalorder %s25, 0
      %p109 = por %p107, %p108
      %p110 = scmp.ne.s32.totalorder %s98, %s99
      %p111 = scmp.eq.s32.totalorder %s26, 1
      %p112 = por %p110, %p111
      %p114 = scmp.ne.s32.totalorder %s99, %s113
      %p115 = scmp.eq.s32.totalorder %s26, 0
      %p116 = por %p114, %p115
      %s118 = sadd.s32 %s117, 1
      %p121 = scmp.eq.s32.totalorder %s20, 1
      %p122 = scmp.ne.s32.totalorder %s117, %s119
      %p123 = scmp.eq.s32.totalorder %s20, 0
      %p124 = por %p122, %p123
      %p125 = scmp.ne.s32.totalorder %s117, %s119
      %p126 = scmp.eq.s32.totalorder %s25, 1
      %p127 = por %p125, %p126
      %p128 = scmp.ne.s32.totalorder %s119, %s120
      %p129 = scmp.eq.s32.totalorder %s25, 0
      %p130 = por %p128, %p129
      %p131 = scmp.ne.s32.totalorder %s119, %s120
      %p132 = scmp.eq.s32.totalorder %s26, 1
      %p133 = por %p131, %p132
      %p135 = scmp.ne.s32.totalorder %s120, %s134
      %p136 = scmp.eq.s32.totalorder %s26, 0
      %p137 = por %p135, %p136
      %s139 = sadd.s32 %s138, 1
      %p142 = scmp.eq.s32.totalorder %s20, 1
      %p143 = scmp.ne.s32.totalorder %s138, %s140
      %p144 = scmp.eq.s32.totalorder %s20, 0
      %p145 = por %p143, %p144
      %p146 = scmp.ne.s32.totalorder %s138, %s140
      %p147 = scmp.eq.s32.totalorder %s25, 1
      %p148 = por %p146, %p147
      %p149 = scmp.ne.s32.totalorder %s140, %s141
      %p150 = scmp.eq.s32.totalorder %s25, 0
      %p151 = por %p149, %p150
      %p152 = scmp.ne.s32.totalorder %s140, %s141
      %p153 = scmp.eq.s32.totalorder %s26, 1
      %p154 = por %p152, %p153
      %p156 = scmp.ne.s32.totalorder %s141, %s155
      %p157 = scmp.eq.s32.totalorder %s26, 0
      %p158 = por %p156, %p157
      %s159 = ssub.s32 %s20, %s27
      %p160 = scmp.eq.s32.totalorder %s159, 0
      %s162 = sadd.s32 %s161, 1
      %s163 = scalar_select %p160, %s161, %s162
      %p166 = pneg %p160
      %p167 = scmp.eq.s32.totalorder %s20, 1
      %p168 = por %p166, %p167
      %p169 = scmp.ne.s32.totalorder %s161, %s164
      %p170 = scmp.eq.s32.totalorder %s20, 0
      %p171 = por %p169, %p170
      %p172 = scmp.ne.s32.totalorder %s161, %s164
      %p173 = scmp.eq.s32.totalorder %s25, 1
      %p174 = por %p172, %p173
      %p175 = scmp.ne.s32.totalorder %s164, %s165
      %p176 = scmp.eq.s32.totalorder %s25, 0
      %p177 = por %p175, %p176
      %p178 = scmp.ne.s32.totalorder %s164, %s165
      %p179 = scmp.eq.s32.totalorder %s26, 1
      %p180 = por %p178, %p179
      %p182 = scmp.ne.s32.totalorder %s165, %s181
      %p183 = scmp.eq.s32.totalorder %s26, 0
      %p184 = por %p182, %p183
      %p185 = scmp.le.s32.totalorder 1, %s20
      %p186 = scmp.lt.s32.totalorder %s20, 3
      %p187 = pnand %p185, %p186
      %p188 = pneg %p187
      // Predicated region
      $region9: #{tpu_custom_call.1} parent=5 // pred_check
        _
      $region10: #{tpu_custom_call.1} parent=5 // pred_check_branch
        %190 = sbr.rel (%p187) target = $region12
      $region11: #{tpu_custom_call.1} parent=5 // pred_region
        %s191 = ssub.s32 %s20, 1
        // Predicated region
        $region13: #{tpu_custom_call.1} parent=11 // pred_check
          %p192 = pneg %p67
        $region14: #{tpu_custom_call.1} parent=11 // pred_check_branch
          %194 = sbr.rel (%p192) target = $region16
        $region15: #{tpu_custom_call.1} parent=11 // pred_region
          %s196 = ssub.s32 512, 512
          %197 = vsyncadd [#allocation6], %s196
          %s198 = sshll.u32 [#allocation5], 4
          %s199 = int_to_ptr.vmem [resolvable:$true] %s198
          %204 = dma.hbm_to_vmem [thread:$0]  %s1, 512, %s199, [#allocation6], 128, 128, 8
        $region16: #{tpu_custom_call.1} parent=11 // pred_fallthru
          _
        // Predicated region
        $region17: #{tpu_custom_call.1} parent=11 // pred_check
          %p205 = pneg %p88
        $region18: #{tpu_custom_call.1} parent=11 // pred_check_branch
          %207 = sbr.rel (%p205) target = $region20
        $region19: #{tpu_custom_call.1} parent=11 // pred_region
          _
        $region20: #{tpu_custom_call.1} parent=11 // pred_fallthru
          _
        // Predicated region
        $region21: #{tpu_custom_call.1} parent=11 // pred_check
          %p208 = pneg %p109
        $region22: #{tpu_custom_call.1} parent=11 // pred_check_branch
          %210 = sbr.rel (%p208) target = $region24
        $region23: #{tpu_custom_call.1} parent=11 // pred_region
          %s212 = ssub.s32 2048, 2048
          %213 = vsyncadd [#allocation6], %s212
          %s214 = sshll.u32 [#allocation7], 4
          %s215 = int_to_ptr.vmem [resolvable:$true] %s214
          %220 = dma.hbm_to_vmem [thread:$0]  %s3, 2048, %s215, [#allocation6], 128, 128, 8
        $region24: #{tpu_custom_call.1} parent=11 // pred_fallthru
          _
        // Predicated region
        $region25: #{tpu_custom_call.1} parent=11 // pred_check
          %p221 = pneg %p130
        $region26: #{tpu_custom_call.1} parent=11 // pred_check_branch
          %223 = sbr.rel (%p221) target = $region28
        $region27: #{tpu_custom_call.1} parent=11 // pred_region
          _
        $region28: #{tpu_custom_call.1} parent=11 // pred_fallthru
          _
        // Predicated region
        $region29: #{tpu_custom_call.1} parent=11 // pred_check
          %p224 = pneg %p151
        $region30: #{tpu_custom_call.1} parent=11 // pred_check_branch
          %226 = sbr.rel (%p224) target = $region32
        $region31: #{tpu_custom_call.1} parent=11 // pred_region
          %s228 = ssub.s32 2048, 2048
          %229 = vsyncadd [#allocation9], %s228
          %s230 = sshll.u32 [#allocation8], 4
          %s231 = int_to_ptr.vmem [resolvable:$true] %s230
          %236 = dma.hbm_to_vmem [thread:$0]  %s5, 2048, %s231, [#allocation9], 128, 128, 8
        $region32: #{tpu_custom_call.1} parent=11 // pred_fallthru
          _
      $region12: #{tpu_custom_call.1} parent=5 // pred_fallthru
        _
      %p237 = scmp.lt.s32.totalorder %s20, 2
      // Predicated region
      $region33: #{tpu_custom_call.1} parent=5 // pred_check
        %p238 = pneg %p237
      $region34: #{tpu_custom_call.1} parent=5 // pred_check_branch
        %240 = sbr.rel (%p238) target = $region36
      $region35: #{tpu_custom_call.1} parent=5 // pred_region
        // Predicated region
        $region37: #{tpu_custom_call.1} parent=35 // pred_check
          %p241 = pneg %p40
        $region38: #{tpu_custom_call.1} parent=35 // pred_check_branch
          %243 = sbr.rel (%p241) target = $region40
        $region39: #{tpu_custom_call.1} parent=35 // pred_region
          %s244 = sand.u32 %s30, 1
          %s245 = scalar_lea.sflag [#allocation3], %s244
          %s246 = sand.u32 %s30, 1
          %s247 = smul.addr %s246, 8
          %s248 = scalar_lea.vmem [#allocation2], %s247
          %s250 = ssub.s32 128, 128
          %251 = vsyncadd %s245, %s250
          %s252 = smul.addr %s20, 128
          %s253 = scalar_lea.hbm %s0, %s252
          %s255 = sshll.u32 %s248, 4
          %s256 = int_to_ptr.vmem [resolvable:$true] %s255
          %258 = dma.hbm_to_vmem [thread:$0]  %s253, 128, %s256, %s245
        $region40: #{tpu_custom_call.1} parent=35 // pred_fallthru
          _
      $region36: #{tpu_custom_call.1} parent=5 // pred_fallthru
        _
      %p259 = scmp.le.s32.totalorder 1, %s20
      %p260 = scmp.lt.s32.totalorder %s20, 3
      %p261 = pnand %p259, %p260
      %p262 = pneg %p261
      // Predicated region
      $region41: #{tpu_custom_call.1} parent=5 // pred_check
        _
      $region42: #{tpu_custom_call.1} parent=5 // pred_check_branch
        %264 = sbr.rel (%p261) target = $region44
      $region43: #{tpu_custom_call.1} parent=5 // pred_region
        %s265 = ssub.s32 %s20, 1
        %s266 = sand.u32 %s33, 1
        %s267 = scalar_lea.sflag [#allocation3], %s266
        %s268 = sand.u32 %s33, 1
        %s269 = smul.addr %s268, 8
        %s270 = scalar_lea.vmem [#allocation2], %s269
        // Predicated region
        $region45: #{tpu_custom_call.1} parent=43 // pred_check
          %p271 = pneg %p46
        $region46: #{tpu_custom_call.1} parent=43 // pred_check_branch
          %273 = sbr.rel (%p271) target = $region48
        $region47: #{tpu_custom_call.1} parent=43 // pred_region
          %274 = dma.done %s267, 128
        $region48: #{tpu_custom_call.1} parent=43 // pred_fallthru
          _
        // Predicated region
        $region49: #{tpu_custom_call.1} parent=43 // pred_check
          %p275 = pneg %p67
        $region50: #{tpu_custom_call.1} parent=43 // pred_check_branch
          %277 = sbr.rel (%p275) target = $region52
        $region51: #{tpu_custom_call.1} parent=43 // pred_region
          %278 = dma.done [#allocation6], 512
        $region52: #{tpu_custom_call.1} parent=43 // pred_fallthru
          _
        // Predicated region
        $region53: #{tpu_custom_call.1} parent=43 // pred_check
          %p279 = pneg %p109
        $region54: #{tpu_custom_call.1} parent=43 // pred_check_branch
          %281 = sbr.rel (%p279) target = $region56
        $region55: #{tpu_custom_call.1} parent=43 // pred_region
          %282 = dma.done [#allocation6], 2048
        $region56: #{tpu_custom_call.1} parent=43 // pred_fallthru
          _
        // Predicated region
        $region57: #{tpu_custom_call.1} parent=43 // pred_check
          %p283 = pneg %p151
        $region58: #{tpu_custom_call.1} parent=43 // pred_check_branch
          %285 = sbr.rel (%p283) target = $region60
        $region59: #{tpu_custom_call.1} parent=43 // pred_region
          %286 = dma.done [#allocation9], 2048
        $region60: #{tpu_custom_call.1} parent=43 // pred_fallthru
          _
        %s287 = sand.u32 %s33, 1
        %s288 = scalar_lea.sflag [#allocation3], %s287
        %s289 = sand.u32 %s33, 1
        %s290 = smul.addr %s289, 8
        %s291 = scalar_lea.vmem [#allocation2], %s290
        %p292 = pneg %p46
        %p293 = pneg %p43
        %p294 = pneg %p67
        %p295 = pneg %p64
        %p296 = pneg %p88
        %p297 = pneg %p85
        %p298 = pneg %p109
        %p299 = pneg %p106
        %p300 = pneg %p130
        %p301 = pneg %p127
        %p302 = pneg %p151
        %p303 = pneg %p148
        %p304 = pneg %p177
        %p305 = pneg %p174
        %s306 = sand.u32 %s164, 1
        %s307 = scalar_lea.sflag [#allocation4], %s306
        %s308 = sand.u32 %s164, 1
        %s309 = smul.addr %s308, 8
        %s310 = scalar_lea.vmem [#allocation10], %s309
        %v311 = vld [vmem:[%s270] sm:$0xff]
        %v312 = vld [vmem:[#allocation5] sm:$0xff]
        %v313 = vld [vmem:[#allocation5 + $0x8] sm:$0xff]
        %v314 = vld [vmem:[#allocation5 + $0x10] sm:$0xff]
        %v315 = vld [vmem:[#allocation5 + $0x18] sm:$0xff]
        %v316 = vld [vmem:[%s2] sm:$0x1]
        %v318 = vlaneseq
        %v319 = vshrl.u32 %v318, 7
        %v320 = vsub.s32 0, %v319
        %v321 = vrot.slane %v316, %v320
        %vm323 = vcmask 261120
        %v325 = vsel %vm323, %v311, 0
        %327 = vmatprep.subr.mxu0 0.0
        %328 = vmatpush1.msra.mxu0 0.0
        %329 = vmatprep.subr.mxu0 0.0
        %330 = vmatpush1.msra.mxu0 0.0
        %331 = vmatprep.subr.mxu0 0.0
        %332 = vmatpush1.msra.mxu0 0.0
        %333 = vmatprep.subr.mxu0 0.0
        %334 = vmatpush1.msra.mxu0 0.0
        %335 = vmatprep.subr.mxu0 0.0
        %336 = vmatpush1.msra.mxu0 0.0
        %337 = vmatprep.subr.mxu0 0.0
        %338 = vmatpush1.msra.mxu0 0.0
        %339 = vmatprep.subr.mxu0 0.0
        %340 = vmatpush1.msra.mxu0 0.0
        %341 = vmatprep.subr.mxu0 0.0
        %342 = vmatpush1.msra.mxu0 0.0
        %343 = vmatprep.subr.mxu0 0.0
        %344 = vmatpush1.msra.mxu0 0.0
        %345 = vmatprep.subr.mxu0 0.0
        %346 = vmatpush1.msra.mxu0 0.0
        %347 = vmatprep.subr.mxu0 0.0
        %348 = vmatpush1.msra.mxu0 0.0
        %349 = vmatprep.subr.mxu0 0.0
        %350 = vmatpush1.msra.mxu0 0.0
        %351 = vmatprep.subr.mxu0 0.0
        %352 = vmatpush1.msra.mxu0 %v315
        %353 = vmatprep.subr.mxu0 0.0
        %354 = vmatpush1.msra.mxu0 %v314
        %355 = vmatprep.subr.mxu0 0.0
        %356 = vmatpush1.msra.mxu0 %v313
        %357 = vmatprep.subr.mxu0 0.0
        %358 = vmatpush1.msra.mxu0 %v312
        %359 = vmatprep.subr.mxu0 0.0
        %360 = vmatpush2.msra.mxu0 0.0
        %361 = vmatprep.subr.mxu0 0.0
        %362 = vmatpush2.msra.mxu0 0.0
        %363 = vmatprep.subr.mxu0 0.0
        %364 = vmatpush2.msra.mxu0 0.0
        %365 = vmatprep.subr.mxu0 0.0
        %366 = vmatpush2.msra.mxu0 0.0
        %367 = vmatprep.subr.mxu0 0.0
        %368 = vmatpush2.msra.mxu0 0.0
        %369 = vmatprep.subr.mxu0 0.0
        %370 = vmatpush2.msra.mxu0 0.0
        %371 = vmatprep.subr.mxu0 0.0
        %372 = vmatpush2.msra.mxu0 0.0
        %373 = vmatprep.subr.mxu0 0.0
        %374 = vmatpush2.msra.mxu0 0.0
        %375 = vmatprep.subr.mxu0 0.0
        %376 = vmatpush2.msra.mxu0 0.0
        %377 = vmatprep.subr.mxu0 0.0
        %378 = vmatpush2.msra.mxu0 0.0
        %379 = vmatprep.subr.mxu0 0.0
        %380 = vmatpush2.msra.mxu0 0.0
        %381 = vmatprep.subr.mxu0 0.0
        %382 = vmatpush2.msra.mxu0 0.0
        %383 = vmatprep.subr.mxu0 0.0
        %384 = vmatpush2.msra.mxu0 0.0
        %385 = vmatprep.subr.mxu0 0.0
        %386 = vmatpush2.msra.mxu0 0.0
        %387 = vmatprep.subr.mxu0 0.0
        %388 = vmatpush2.msra.mxu0 0.0
        %389 = vmatprep.subr.mxu0 0.0
        %390 = vmatpush2.msra.mxu0 0.0
        %391 = vmatprep.mubr.f32.mxu0 0.0
        %392 = vmatmul.mubr.f32.gmra.mxu0 %v325
        %v393 = vpop.f32.mrf.mxu0
        %v394 = vadd.f32 %v321, %v393
        %v395 = vpop.f32.mrf.mxu0
        %396 = vdwg.mxu0
        %v397 = vmul.f32 %v394, 0.5
        %v398 = vmul.f32 %v394, 0.70710677
        %v399 = verf.f32.pop %v398
        %v400 = vadd.f32 %v399, 1.0
        %v401 = vmul.f32 %v397, %v400
        %v402 = vld [vmem:[#allocation7] sm:$0xff]
        %v403 = vld [vmem:[#allocation7 + $0x8] sm:$0xff]
        %v404 = vld [vmem:[#allocation7 + $0x10] sm:$0xff]
        %v405 = vld [vmem:[#allocation7 + $0x18] sm:$0xff]
        %v406 = vld [vmem:[#allocation7 + $0x20] sm:$0xff]
        %v407 = vld [vmem:[#allocation7 + $0x28] sm:$0xff]
        %v408 = vld [vmem:[#allocation7 + $0x30] sm:$0xff]
        %v409 = vld [vmem:[#allocation7 + $0x38] sm:$0xff]
        %v410 = vld [vmem:[#allocation7 + $0x40] sm:$0xff]
        %v411 = vld [vmem:[#allocation7 + $0x48] sm:$0xff]
        %v412 = vld [vmem:[#allocation7 + $0x50] sm:$0xff]
        %v413 = vld [vmem:[#allocation7 + $0x58] sm:$0xff]
        %v414 = vld [vmem:[#allocation7 + $0x60] sm:$0xff]
        %v415 = vld [vmem:[#allocation7 + $0x68] sm:$0xff]
        %v416 = vld [vmem:[#allocation7 + $0x70] sm:$0xff]
        %v417 = vld [vmem:[#allocation7 + $0x78] sm:$0xff]
        %v418 = vld [vmem:[%s4] sm:$0x1]
        %v420 = vlaneseq
        %v421 = vshrl.u32 %v420, 7
        %v422 = vsub.s32 0, %v421
        %v423 = vrot.slane %v418, %v422
        %425 = vmatprep.subr.mxu0 0.0
        %426 = vmatpush1.msra.mxu0 %v417
        %427 = vmatprep.subr.mxu0 0.0
        %428 = vmatpush1.msra.mxu0 %v416
        %429 = vmatprep.subr.mxu0 0.0
        %430 = vmatpush1.msra.mxu0 %v415
        %431 = vmatprep.subr.mxu0 0.0
        %432 = vmatpush1.msra.mxu0 %v414
        %433 = vmatprep.subr.mxu0 0.0
        %434 = vmatpush1.msra.mxu0 %v413
        %435 = vmatprep.subr.mxu0 0.0
        %436 = vmatpush1.msra.mxu0 %v412
        %437 = vmatprep.subr.mxu0 0.0
        %438 = vmatpush1.msra.mxu0 %v411
        %439 = vmatprep.subr.mxu0 0.0
        %440 = vmatpush1.msra.mxu0 %v410
        %441 = vmatprep.subr.mxu0 0.0
        %442 = vmatpush1.msra.mxu0 %v409
        %443 = vmatprep.subr.mxu0 0.0
        %444 = vmatpush1.msra.mxu0 %v408
        %445 = vmatprep.subr.mxu0 0.0
        %446 = vmatpush1.msra.mxu0 %v407
        %447 = vmatprep.subr.mxu0 0.0
        %448 = vmatpush1.msra.mxu0 %v406
        %449 = vmatprep.subr.mxu0 0.0
        %450 = vmatpush1.msra.mxu0 %v405
        %451 = vmatprep.subr.mxu0 0.0
        %452 = vmatpush1.msra.mxu0 %v404
        %453 = vmatprep.subr.mxu0 0.0
        %454 = vmatpush1.msra.mxu0 %v403
        %455 = vmatprep.subr.mxu0 0.0
        %456 = vmatpush1.msra.mxu0 %v402
        %457 = vmatprep.subr.mxu0 0.0
        %458 = vmatpush2.msra.mxu0 0.0
        %459 = vmatprep.subr.mxu0 0.0
        %460 = vmatpush2.msra.mxu0 0.0
        %461 = vmatprep.subr.mxu0 0.0
        %462 = vmatpush2.msra.mxu0 0.0
        %463 = vmatprep.subr.mxu0 0.0
        %464 = vmatpush2.msra.mxu0 0.0
        %465 = vmatprep.subr.mxu0 0.0
        %466 = vmatpush2.msra.mxu0 0.0
        %467 = vmatprep.subr.mxu0 0.0
        %468 = vmatpush2.msra.mxu0 0.0
        %469 = vmatprep.subr.mxu0 0.0
        %470 = vmatpush2.msra.mxu0 0.0
        %471 = vmatprep.subr.mxu0 0.0
        %472 = vmatpush2.msra.mxu0 0.0
        %473 = vmatprep.subr.mxu0 0.0
        %474 = vmatpush2.msra.mxu0 0.0
        %475 = vmatprep.subr.mxu0 0.0
        %476 = vmatpush2.msra.mxu0 0.0
        %477 = vmatprep.subr.mxu0 0.0
        %478 = vmatpush2.msra.mxu0 0.0
        %479 = vmatprep.subr.mxu0 0.0
        %480 = vmatpush2.msra.mxu0 0.0
        %481 = vmatprep.subr.mxu0 0.0
        %482 = vmatpush2.msra.mxu0 0.0
        %483 = vmatprep.subr.mxu0 0.0
        %484 = vmatpush2.msra.mxu0 0.0
        %485 = vmatprep.subr.mxu0 0.0
        %486 = vmatpush2.msra.mxu0 0.0
        %487 = vmatprep.subr.mxu0 0.0
        %488 = vmatpush2.msra.mxu0 0.0
        %489 = vmatprep.mubr.f32.mxu0 0.0
        %490 = vmatmul.mubr.f32.gmra.mxu0 %v401
        %v491 = vpop.f32.mrf.mxu0
        %v492 = vadd.f32 %v423, %v491
        %v493 = vpop.f32.mrf.mxu0
        %494 = vdwg.mxu0
        %v495 = vmul.f32 %v492, 0.5
        %v496 = vmul.f32 %v492, 0.70710677
        %v497 = verf.f32.pop %v496
        %v498 = vadd.f32 %v497, 1.0
        %v499 = vmul.f32 %v495, %v498
        %v500 = vld [vmem:[#allocation8] sm:$0xff]
        %v501 = vld [vmem:[#allocation8 + $0x8] sm:$0xff]
        %v502 = vld [vmem:[#allocation8 + $0x10] sm:$0xff]
        %v503 = vld [vmem:[#allocation8 + $0x18] sm:$0xff]
        %v504 = vld [vmem:[#allocation8 + $0x20] sm:$0xff]
        %v505 = vld [vmem:[#allocation8 + $0x28] sm:$0xff]
        %v506 = vld [vmem:[#allocation8 + $0x30] sm:$0xff]
        %v507 = vld [vmem:[#allocation8 + $0x38] sm:$0xff]
        %v508 = vld [vmem:[#allocation8 + $0x40] sm:$0xff]
        %v509 = vld [vmem:[#allocation8 + $0x48] sm:$0xff]
        %v510 = vld [vmem:[#allocation8 + $0x50] sm:$0xff]
        %v511 = vld [vmem:[#allocation8 + $0x58] sm:$0xff]
        %v512 = vld [vmem:[#allocation8 + $0x60] sm:$0xff]
        %v513 = vld [vmem:[#allocation8 + $0x68] sm:$0xff]
        %v514 = vld [vmem:[#allocation8 + $0x70] sm:$0xff]
        %v515 = vld [vmem:[#allocation8 + $0x78] sm:$0xff]
        %516 = vmatprep.subr.mxu0 0.0
        %517 = vmatpush1.msra.mxu0 %v515
        %518 = vmatprep.subr.mxu0 0.0
        %519 = vmatpush1.msra.mxu0 %v514
        %520 = vmatprep.subr.mxu0 0.0
        %521 = vmatpush1.msra.mxu0 %v513
        %522 = vmatprep.subr.mxu0 0.0
        %523 = vmatpush1.msra.mxu0 %v512
        %524 = vmatprep.subr.mxu0 0.0
        %525 = vmatpush1.msra.mxu0 %v511
        %526 = vmatprep.subr.mxu0 0.0
        %527 = vmatpush1.msra.mxu0 %v510
        %528 = vmatprep.subr.mxu0 0.0
        %529 = vmatpush1.msra.mxu0 %v509
        %530 = vmatprep.subr.mxu0 0.0
        %531 = vmatpush1.msra.mxu0 %v508
        %532 = vmatprep.subr.mxu0 0.0
        %533 = vmatpush1.msra.mxu0 %v507
        %534 = vmatprep.subr.mxu0 0.0
        %535 = vmatpush1.msra.mxu0 %v506
        %536 = vmatprep.subr.mxu0 0.0
        %537 = vmatpush1.msra.mxu0 %v505
        %538 = vmatprep.subr.mxu0 0.0
        %539 = vmatpush1.msra.mxu0 %v504
        %540 = vmatprep.subr.mxu0 0.0
        %541 = vmatpush1.msra.mxu0 %v503
        %542 = vmatprep.subr.mxu0 0.0
        %543 = vmatpush1.msra.mxu0 %v502
        %544 = vmatprep.subr.mxu0 0.0
        %545 = vmatpush1.msra.mxu0 %v501
        %546 = vmatprep.subr.mxu0 0.0
        %547 = vmatpush1.msra.mxu0 %v500
        %548 = vmatprep.subr.mxu0 0.0
        %549 = vmatpush2.msra.mxu0 0.0
        %550 = vmatprep.subr.mxu0 0.0
        %551 = vmatpush2.msra.mxu0 0.0
        %552 = vmatprep.subr.mxu0 0.0
        %553 = vmatpush2.msra.mxu0 0.0
        %554 = vmatprep.subr.mxu0 0.0
        %555 = vmatpush2.msra.mxu0 0.0
        %556 = vmatprep.subr.mxu0 0.0
        %557 = vmatpush2.msra.mxu0 0.0
        %558 = vmatprep.subr.mxu0 0.0
        %559 = vmatpush2.msra.mxu0 0.0
        %560 = vmatprep.subr.mxu0 0.0
        %561 = vmatpush2.msra.mxu0 0.0
        %562 = vmatprep.subr.mxu0 0.0
        %563 = vmatpush2.msra.mxu0 0.0
        %564 = vmatprep.subr.mxu0 0.0
        %565 = vmatpush2.msra.mxu0 0.0
        %566 = vmatprep.subr.mxu0 0.0
        %567 = vmatpush2.msra.mxu0 0.0
        %568 = vmatprep.subr.mxu0 0.0
        %569 = vmatpush2.msra.mxu0 0.0
        %570 = vmatprep.subr.mxu0 0.0
        %571 = vmatpush2.msra.mxu0 0.0
        %572 = vmatprep.subr.mxu0 0.0
        %573 = vmatpush2.msra.mxu0 0.0
        %574 = vmatprep.subr.mxu0 0.0
        %575 = vmatpush2.msra.mxu0 0.0
        %576 = vmatprep.subr.mxu0 0.0
        %577 = vmatpush2.msra.mxu0 0.0
        %578 = vmatprep.subr.mxu0 0.0
        %579 = vmatpush2.msra.mxu0 0.0
        %580 = vmatprep.mubr.f32.mxu0 0.0
        %581 = vmatmul.mubr.f32.gmra.mxu0 %v499
        %v582 = vpop.f32.mrf.mxu0
        %v583 = vadd.f32 0.0, %v582
        %v584 = vpop.f32.mrf.mxu0
        %585 = vdwg.mxu0
        %586 = vst.msk [vmem:[%s310] sm:$0xff] %vm323, %v583
        %s587 = sand.u32 %s164, 1
        %s588 = scalar_lea.sflag [#allocation4], %s587
        %s589 = sand.u32 %s164, 1
        %s590 = smul.addr %s589, 8
        %s591 = scalar_lea.vmem [#allocation10], %s590
        // Predicated region
        $region61: #{tpu_custom_call.1} parent=43 // pred_check
          %p592 = pneg %p174
        $region62: #{tpu_custom_call.1} parent=43 // pred_check_branch
          %594 = sbr.rel (%p592) target = $region64
        $region63: #{tpu_custom_call.1} parent=43 // pred_region
          %s596 = ssub.s32 128, 128
          %597 = vsyncadd %s588, %s596
          %s598 = smul.addr %s25, 128
          %s599 = scalar_lea.hbm %s6, %s598
          %s601 = sshll.u32 %s591, 4
          %s602 = int_to_ptr.vmem [resolvable:$true] %s601
          %604 = dma.vmem_to_hbm [thread:$0]  %s602, 128, %s599, %s588
        $region64: #{tpu_custom_call.1} parent=43 // pred_fallthru
          _
      $region44: #{tpu_custom_call.1} parent=5 // pred_fallthru
        _
      %p605 = scmp.le.s32.totalorder 2, %s20
      // Predicated region
      $region65: #{tpu_custom_call.1} parent=5 // pred_check
        %p606 = pneg %p605
      $region66: #{tpu_custom_call.1} parent=5 // pred_check_branch
        %608 = sbr.rel (%p606) target = $region68
      $region67: #{tpu_custom_call.1} parent=5 // pred_region
        %s609 = ssub.s32 %s20, 2
        // Predicated region
        $region69: #{tpu_custom_call.1} parent=67 // pred_check
          %p610 = pneg %p180
        $region70: #{tpu_custom_call.1} parent=67 // pred_check_branch
          %612 = sbr.rel (%p610) target = $region72
        $region71: #{tpu_custom_call.1} parent=67 // pred_region
          %s613 = sand.u32 %s165, 1
          %s614 = scalar_lea.sflag [#allocation4], %s613
          %s615 = sand.u32 %s165, 1
          %s616 = smul.addr %s615, 8
          %s617 = scalar_lea.vmem [#allocation10], %s616
          %618 = dma.done %s614, 128
        $region72: #{tpu_custom_call.1} parent=67 // pred_fallthru
          _
      $region68: #{tpu_custom_call.1} parent=5 // pred_fallthru
        _
    $region6: #{tpu_custom_call.1} parent=1 // loop_footer
      %s24 = sadd.s32 1, %s20
    $region7: #{tpu_custom_call.1} parent=1 // loop_footer_branch
      %19 = sbr.rel target = $region3
    $region8: #{tpu_custom_call.1} parent=1 // loop_exit
      _
    %619 = vsyncpa [#allocation3], 1
    %s620 = scalar_lea.sflag [#allocation3], 1
    %621 = vsyncpa %s620, 1
    %622 = vsyncpa [#allocation6], 1
    %623 = vsyncpa [#allocation9], 1
    %624 = vsyncpa [#allocation4], 1
    %s625 = scalar_lea.sflag [#allocation4], 1
    %626 = vsyncpa %s625, 1

</llo_original>
